<compile_context>
chip_gen: v6e
topology: v6e:2x2x1
jax: 0.10.0
libtpu: 0.0.40
codegen_flags: <defaults>
</compile_context>

<pallas_src>
import functools

import jax
import jax.numpy as jnp
from jax import lax
from jax.experimental import pallas as pl
from jax.experimental.pallas import tpu as pltpu

EPS_INTERP = 1e-10          # Interpolating.epsilon
EPS_BN = 1e-5               # torch.nn.BatchNorm1d default eps
VMEM_LIMIT = 32 * 1024 * 1024  # fits v7x's 64 MiB physical VMEM with headroom


# --------------------------------------------------------------------------------------
# Kernel A: K-NN inverse-distance interpolation + concat with the skip features.
# Grid: (B, N // tile_n), fully parallel.  Channels-first tiles, points on lanes.
# --------------------------------------------------------------------------------------
def _interp_kernel(xu_ref, xs_ref, fs_ref, fu_ref, out_ref, *, K):
    xu = xu_ref[0]                         # (D,  tN)  target point coords (channels-first)
    xs = xs_ref[0]                         # (S,  D)   sampled point coords
    fs = fs_ref[0]                         # (C2, S)   sampled features   (channels-first)
    fu = fu_ref[0]                         # (C1, tN)  skip features      (channels-first)
    S = xs.shape[0]
    C2 = fs.shape[0]

    # squared pairwise distances, (S, tN): ||xs||^2 + ||xu||^2 - 2 xs.xu  (f32: the
    # argmin must match the reference ordering, so no bf16 here; contraction dim is D=3)
    t_u = jnp.sum(xu * xu, axis=0, keepdims=True)                      # (1, tN)
    t_s = jnp.sum(xs * xs, axis=1, keepdims=True)                      # (S, 1)
    t_x = jnp.dot(xs, xu, preferred_element_type=jnp.float32)          # (S, tN)
    d2 = jnp.maximum(t_s + t_u - 2.0 * t_x, 0.0)

    # K nearest neighbours -> sparse (unnormalized) inverse-distance weight matrix.
    # argmin is invariant under sqrt; rsqrt(max(d2, eps^2)) == 1 / max(sqrt(d2), eps).
    iota = lax.broadcasted_iota(jnp.int32, (S, 1), 0)                  # tiny, per-tile
    W = jnp.zeros_like(d2)                                             # (S, tN)
    wsum = jnp.zeros_like(t_u)                                         # (1, tN)
    dcur = d2
    for _ in range(K):
        dmin = jnp.min(dcur, axis=0, keepdims=True)                    # (1, tN)
        idx = jnp.min(jnp.where(dcur == dmin, iota, S),
                      axis=0, keepdims=True)                           # first argmin
        onehot = (iota == idx)                                         # (S, tN)
        wk = lax.rsqrt(jnp.maximum(dmin, EPS_INTERP * EPS_INTERP))     # (1, tN)
        wsum = wsum + wk
        W = W + jnp.where(onehot, wk, 0.0)
        dcur = jnp.where(onehot, jnp.float32(jnp.inf), dcur)

    # interpolation as a single MXU matmul (bf16 operands, f32 accumulation), then
    # normalize the (C2, tN) result instead of the (S, tN) weights.
    interp = jnp.dot(fs.astype(jnp.bfloat16), W.astype(jnp.bfloat16),
                     preferred_element_type=jnp.float32)               # (C2, tN)
    interp = interp * pl.reciprocal(wsum, approx=True)

    # fused concat([interp, fu]) written directly into the output tile (lane-dense store)
    out_ref[0, 0:C2, :] = interp.astype(out_ref.dtype)
    out_ref[0, C2:, :] = fu.astype(out_ref.dtype)


# --------------------------------------------------------------------------------------
# Kernel B: one Conv1d(k=1) + BatchNorm1d(training stats) + ReLU layer.
# Grid: (2, B, N // tile_n).  Phase 0 accumulates per-channel sum/sumsq across all tiles
# (VMEM scratch, "arbitrary" semantics => sequential, single-core), phase 1 normalizes.
# --------------------------------------------------------------------------------------
def _mlp_bn_relu_kernel(x_ref, w_ref, b_ref, g_ref, be_ref, out_ref,
                        sum_ref, sq_ref, *, inv_count):
    phase = pl.program_id(0)
    is_first = ((pl.program_id(0) == 0) & (pl.program_id(1) == 0)
                & (pl.program_id(2) == 0))

    x = x_ref[0].astype(jnp.bfloat16)                                  # (Cin,  tN)
    w = w_ref[...].astype(jnp.bfloat16)                                # (Cout, Cin)
    y = jnp.dot(w, x, preferred_element_type=jnp.float32) + b_ref[...]  # (Cout, tN)

    @pl.when(is_first)
    def _():
        sum_ref[...] = jnp.zeros_like(sum_ref)
        sq_ref[...] = jnp.zeros_like(sq_ref)

    @pl.when(phase == 0)
    def _():
        sum_ref[...] += jnp.sum(y, axis=1, keepdims=True)
        sq_ref[...] += jnp.sum(y * y, axis=1, keepdims=True)
        # placeholder write (overwritten in phase 1); keeps the output buffer defined
        out_ref[0] = jnp.maximum(y, 0.0).astype(out_ref.dtype)

    @pl.when(phase == 1)
    def _():
        mean = sum_ref[...] * inv_count                                # (Cout, 1)
        var = jnp.maximum(sq_ref[...] * inv_count - mean * mean, 0.0)
        scale = lax.rsqrt(var + EPS_BN) * g_ref[...]
        out_ref[0] = jnp.maximum((y - mean) * scale + be_ref[...],
                                 0.0).astype(out_ref.dtype)


# --------------------------------------------------------------------------------------
# Wrapper.  Inputs/outputs use the PyTorch module's channels-last layout; the cheap
# transposes to channels-first (points-on-lanes) happen in the wrapper.
# --------------------------------------------------------------------------------------
def pointnet_feature_propagation(xu, xs, fu, fs, params, *, K, tile_n=None):
    """params: list of (w (Cout,Cin), b (Cout,), gamma (Cout,), beta (Cout,)) per layer.
    Layer 0's Cin must equal fs.shape[-1] + fu.shape[-1] (use_x_complete_unsampled=True)."""
    B, N, D = xu.shape
    S = xs.shape[1]
    C1 = fu.shape[-1]
    C2 = fs.shape[-1]
    c_in0 = C2 + C1
    assert params[0][0].shape[1] == c_in0
    # TODO(synk): num_points==1 and K>num_points edge cases of Interpolating are not implemented.
    assert S >= K

    if tile_n is None:
        # Per-tile K-NN working set ~ 4 * S * tile_n * 4B; 512-wide tiles stay well under
        # the 32 MiB scoped VMEM budget for S up to ~2K (halve tile_n for larger S / v7x).
        tile_n = N if N <= 512 else 512
    if tile_n != N:
        assert tile_n % 128 == 0, "tile_n must be a multiple of 128 (lane dim)"
    # TODO(synk): ragged N (N % tile_n != 0) needs masked BN statistics; not implemented.
    assert N % tile_n == 0
    n_tiles = N // tile_n

    # channels-first views (small XLA transposes outside the kernels)
    xu_cf = jnp.transpose(xu, (0, 2, 1))   # (B, D,  N)
    fu_cf = jnp.transpose(fu, (0, 2, 1))   # (B, C1, N)
    fs_cf = jnp.transpose(fs, (0, 2, 1))   # (B, C2, S)

    # ---- kernel A: interpolation + concat -> x0 (B, C2+C1, N), stored bf16 ----
    x0 = pl.pallas_call(
        functools.partial(_interp_kernel, K=K),
        out_shape=jax.ShapeDtypeStruct((B, c_in0, N), jnp.bfloat16),
        grid=(B, n_tiles),
        in_specs=[
            pl.BlockSpec((1, D, tile_n), lambda bb, t: (bb, 0, t)),
            pl.BlockSpec((1, S, D), lambda bb, t: (bb, 0, 0)),
            pl.BlockSpec((1, C2, S), lambda bb, t: (bb, 0, 0)),
            pl.BlockSpec((1, C1, tile_n), lambda bb, t: (bb, 0, t)),
        ],
        out_specs=pl.BlockSpec((1, c_in0, tile_n), lambda bb, t: (bb, 0, t)),
        compiler_params=pltpu.CompilerParams(
            dimension_semantics=("parallel", "parallel"),
            vmem_limit_bytes=VMEM_LIMIT),
    )(xu_cf, xs, fs_cf, fu_cf)

    # ---- kernel B per layer: Conv1d(k=1) + BN(train stats) + ReLU, two-phase grid ----
    inv_count = 1.0 / float(B * N)
    x_cur = x0
    c_in = c_in0
    for li, (w, b, g, be) in enumerate(params):
        c_out = w.shape[0]
        out_dtype = jnp.float32 if li == len(params) - 1 else jnp.bfloat16
        x_cur = pl.pallas_call(
            functools.partial(_mlp_bn_relu_kernel, inv_count=inv_count),
            out_shape=jax.ShapeDtypeStruct((B, c_out, N), out_dtype),
            grid=(2, B, n_tiles),
            in_specs=[
                pl.BlockSpec((1, c_in, tile_n), lambda p, bb, t: (bb, 0, t)),
                pl.BlockSpec((c_out, c_in), lambda p, bb, t: (0, 0)),
                pl.BlockSpec((c_out, 1), lambda p, bb, t: (0, 0)),
                pl.BlockSpec((c_out, 1), lambda p, bb, t: (0, 0)),
                pl.BlockSpec((c_out, 1), lambda p, bb, t: (0, 0)),
            ],
            out_specs=pl.BlockSpec((1, c_out, tile_n), lambda p, bb, t: (bb, 0, t)),
            scratch_shapes=[pltpu.VMEM((c_out, 1), jnp.float32),
                            pltpu.VMEM((c_out, 1), jnp.float32)],
            compiler_params=pltpu.CompilerParams(
                dimension_semantics=("arbitrary", "arbitrary", "arbitrary"),
                vmem_limit_bytes=VMEM_LIMIT),
        )(x_cur, w, b.reshape(c_out, 1), g.reshape(c_out, 1), be.reshape(c_out, 1))
        c_in = c_out

    # PyTorch forward returns channels-last (B, N, C_last)
    return jnp.transpose(x_cur, (0, 2, 1))


# --------------------------------------------------------------------------------------
# Pure-JAX reference mirroring the PyTorch forward (training-mode BN, f32 everywhere).
# TODO(synk): the BN running-stat update driven by bn_decay_value is a training side
# effect with no influence on the returned output; it is not reproduced.
# --------------------------------------------------------------------------------------
def reference_forward(xu, xs, fu, fs, params, *, K):
    t1 = jnp.sum(xu ** 2, -1, keepdims=True)
    t2 = jnp.sum(xs ** 2, -1)[:, None, :]
    t3 = jnp.einsum('bnd,bsd->bns', xu, xs)
    dist = jnp.sqrt(jnp.maximum(t1 + t2 - 2.0 * t3, 0.0))
    order = jnp.argsort(dist, axis=-1)[:, :, :K]
    dk = jnp.take_along_axis(dist, order, axis=-1)
    w = 1.0 / jnp.maximum(dk, EPS_INTERP)
    w = w / jnp.sum(w, -1, keepdims=True)
    gathered = jnp.take_along_axis(fs[:, None, :, :], order[..., None], axis=2)
    interp = jnp.sum(gathered * w[..., None], axis=2)
    x = jnp.concatenate([interp, fu], axis=-1)
    for (wmat, b, g, be) in params:
        y = jnp.einsum('bnc,oc->bno', x, wmat) + b
        mean = jnp.mean(y, axis=(0, 1), keepdims=True)
        var = jnp.mean((y - mean) ** 2, axis=(0, 1), keepdims=True)
        y = (y - mean) * lax.rsqrt(var + EPS_BN) * g + be
        x = jnp.maximum(y, 0.0)
    return x


if __name__ == "__main__":
    # Module config: nb_interpolating_points=3, use_x_complete_unsampled=True,
    # in_channel_complete_sampled=8, in_channel_complete_unsampled=4,
    # list_dim_channels=[32, 16], batch_size=2.
    B, N, S, D = 2, 16, 8, 3
    C2, C1 = 8, 4
    list_dim_channels = [32, 16]
    K = 3

    key = jax.random.PRNGKey(0)
    k0, k1, k2, k3 = jax.random.split(key, 4)
    x_unsampled = jax.random.normal(k0, (B, N, D), jnp.float32)            # target coords
    x_sampled = jax.random.normal(k1, (B, S, D), jnp.float32)              # sampled coords
    x_complete_unsampled = jax.random.normal(k2, (B, N, C1), jnp.float32)  # skip features
    x_complete_sampled = jax.random.normal(k3, (B, S, C2), jnp.float32)    # sampled features

    # Conv1d weight (Cout, Cin, 1) stored squeezed as (Cout, Cin); BN gamma/beta per channel.
    params = []
    last = C2 + C1
    pkey = jax.random.PRNGKey(1)
    for out_c in list_dim_channels:
        pkey, kw, kb, kg, kbe = jax.random.split(pkey, 5)
        w = 0.2 * jax.random.normal(kw, (out_c, last), jnp.float32)
        b = 0.1 * jax.random.normal(kb, (out_c,), jnp.float32)
        g = 1.0 + 0.1 * jax.random.normal(kg, (out_c,), jnp.float32)
        be = 0.1 * jax.random.normal(kbe, (out_c,), jnp.float32)
        params.append((w, b, g, be))
        last = out_c

    out = pointnet_feature_propagation(
        x_unsampled, x_sampled, x_complete_unsampled, x_complete_sampled,
        params, K=K)
    out = jax.block_until_ready(out)

    ref = reference_forward(x_unsampled, x_sampled, x_complete_unsampled,
                            x_complete_sampled, params, K=K)
    assert out.shape == (B, N, list_dim_channels[-1]), out.shape
    # bf16 MXU operands (per perf guidance) + bf16 intermediate activations vs a pure-f32
    # reference: per-element deviation is ~1e-2 after BN rescaling through two layers.
    err = float(jnp.max(jnp.abs(out - ref)))
    if err > 5e-2:
        raise AssertionError(f"kernel mismatch vs reference, max abs err = {err}")
    print("KERNEL_OK")
</pallas_src>

<mosaic_0001>
module attributes {stable_mosaic.version = 11 : i64} {
  func.func @_interp_kernel(%arg0: i32, %arg1: i32, %arg2: memref<1x3x16xf32, #tpu.memory_space<vmem>>, %arg3: memref<1x8x3xf32, #tpu.memory_space<vmem>>, %arg4: memref<1x8x8xf32, #tpu.memory_space<vmem>>, %arg5: memref<1x4x16xf32, #tpu.memory_space<vmem>>, %arg6: memref<1x12x16xbf16, #tpu.memory_space<vmem>>) attributes {dimension_semantics = [#tpu.dimension_semantics<parallel>, #tpu.dimension_semantics<parallel>], iteration_bounds = array<i64: 2, 1>, scalar_prefetch = 0 : i64, scratch_operands = 0 : i64, tpu.core_type = #tpu.core_type<tc>, window_params = [{transform_indices = @transform_0, window_bounds = array<i64: 1, 3, 16>}, {transform_indices = @transform_1, window_bounds = array<i64: 1, 8, 3>}, {transform_indices = @transform_2, window_bounds = array<i64: 1, 8, 8>}, {transform_indices = @transform_3, window_bounds = array<i64: 1, 4, 16>}, {transform_indices = @transform_4, window_bounds = array<i64: 1, 12, 16>}]} {
    %c0 = arith.constant 0 : index
    %c0_0 = arith.constant 0 : index
    %c0_1 = arith.constant 0 : index
    %0 = vector.load %arg2[%c0, %c0_0, %c0_1] : memref<1x3x16xf32, #tpu.memory_space<vmem>>, vector<1x3x16xf32>
    %1 = vector.shape_cast %0 : vector<1x3x16xf32> to vector<3x16xf32>
    %c0_2 = arith.constant 0 : index
    %c0_3 = arith.constant 0 : index
    %c0_4 = arith.constant 0 : index
    %2 = vector.load %arg3[%c0_2, %c0_3, %c0_4] : memref<1x8x3xf32, #tpu.memory_space<vmem>>, vector<1x8x3xf32>
    %3 = vector.shape_cast %2 : vector<1x8x3xf32> to vector<8x3xf32>
    %c0_5 = arith.constant 0 : index
    %c0_6 = arith.constant 0 : index
    %c0_7 = arith.constant 0 : index
    %4 = vector.load %arg4[%c0_5, %c0_6, %c0_7] : memref<1x8x8xf32, #tpu.memory_space<vmem>>, vector<1x8x8xf32>
    %5 = vector.shape_cast %4 : vector<1x8x8xf32> to vector<8x8xf32>
    %c0_8 = arith.constant 0 : index
    %c0_9 = arith.constant 0 : index
    %c0_10 = arith.constant 0 : index
    %6 = vector.load %arg5[%c0_8, %c0_9, %c0_10] : memref<1x4x16xf32, #tpu.memory_space<vmem>>, vector<1x4x16xf32>
    %7 = vector.shape_cast %6 : vector<1x4x16xf32> to vector<4x16xf32>
    %8 = arith.mulf %1, %1 : vector<3x16xf32>
    %cst = arith.constant dense<0.000000e+00> : vector<16xf32>
    %9 = vector.multi_reduction <add>, %8, %cst [0] : vector<3x16xf32> to vector<16xf32>
    %10 = vector.shape_cast %9 : vector<16xf32> to vector<1x16xf32>
    %11 = arith.mulf %3, %3 : vector<8x3xf32>
    %cst_11 = arith.constant dense<0.000000e+00> : vector<8xf32>
    %12 = vector.multi_reduction <add>, %11, %cst_11 [1] : vector<8x3xf32> to vector<8xf32>
    %13 = vector.shape_cast %12 : vector<8xf32> to vector<8x1xf32>
    %cst_12 = arith.constant dense<0.000000e+00> : vector<8x16xf32>
    %14 = tpu.matmul %3, %1, %cst_12 {dimension_numbers = #tpu.dot_dimension_numbers<[1], [0], [0], [1], [0, 0, 1, 1], [], []>} : vector<8x3xf32>, vector<3x16xf32>, vector<8x16xf32> -> vector<8x16xf32>
    %15 = vector.broadcast %13 : vector<8x1xf32> to vector<8x16xf32>
    %16 = vector.broadcast %10 : vector<1x16xf32> to vector<8x16xf32>
    %17 = arith.addf %15, %16 : vector<8x16xf32>
    %cst_13 = arith.constant 2.000000e+00 : f32
    %18 = vector.broadcast %cst_13 : f32 to vector<8x16xf32>
    %19 = arith.mulf %18, %14 : vector<8x16xf32>
    %20 = arith.subf %17, %19 : vector<8x16xf32>
    %cst_14 = arith.constant 0.000000e+00 : f32
    %21 = vector.broadcast %cst_14 : f32 to vector<8x16xf32>
    %22 = arith.maximumf %20, %21 : vector<8x16xf32>
    %23 = tpu.iota {dimensions = array<i32: 0>} : vector<8x1xi32>
    %cst_15 = arith.constant 0.000000e+00 : f32
    %24 = vector.broadcast %cst_15 : f32 to vector<8x16xf32>
    %cst_16 = arith.constant 0.000000e+00 : f32
    %25 = vector.broadcast %cst_16 : f32 to vector<1x16xf32>
    %cst_17 = arith.constant dense<0x7F800000> : vector<16xf32>
    %26 = vector.multi_reduction <minimumf>, %22, %cst_17 [0] : vector<8x16xf32> to vector<16xf32>
    %27 = vector.shape_cast %26 : vector<16xf32> to vector<1x16xf32>
    %28 = vector.broadcast %27 : vector<1x16xf32> to vector<8x16xf32>
    %29 = arith.cmpf oeq, %22, %28 : vector<8x16xf32>
    %c8_i32 = arith.constant 8 : i32
    %30 = vector.shape_cast %23 : vector<8x1xi32> to vector<8x1xi32>
    %31 = vector.broadcast %30 : vector<8x1xi32> to vector<8x16xi32>
    %32 = vector.broadcast %c8_i32 : i32 to vector<8x16xi32>
    %33 = arith.select %29, %31, %32 : vector<8x16xi1>, vector<8x16xi32>
    %cst_18 = arith.constant dense<2147483647> : vector<16xi32>
    %34 = vector.multi_reduction <minsi>, %33, %cst_18 [0] : vector<8x16xi32> to vector<16xi32>
    %35 = vector.shape_cast %34 : vector<16xi32> to vector<1x16xi32>
    %36 = vector.broadcast %23 : vector<8x1xi32> to vector<8x16xi32>
    %37 = vector.broadcast %35 : vector<1x16xi32> to vector<8x16xi32>
    %38 = arith.cmpi eq, %36, %37 : vector<8x16xi32>
    %cst_19 = arith.constant 9.99999968E-21 : f32
    %39 = vector.broadcast %cst_19 : f32 to vector<1x16xf32>
    %40 = arith.maximumf %27, %39 : vector<1x16xf32>
    %41 = math.rsqrt %40 : vector<1x16xf32>
    %42 = arith.addf %25, %41 : vector<1x16xf32>
    %cst_20 = arith.constant 0.000000e+00 : f32
    %43 = vector.shape_cast %41 : vector<1x16xf32> to vector<1x16xf32>
    %44 = vector.broadcast %43 : vector<1x16xf32> to vector<8x16xf32>
    %45 = vector.broadcast %cst_20 : f32 to vector<8x16xf32>
    %46 = arith.select %38, %44, %45 : vector<8x16xi1>, vector<8x16xf32>
    %47 = arith.addf %24, %46 : vector<8x16xf32>
    %cst_21 = arith.constant 0x7F800000 : f32
    %48 = vector.broadcast %cst_21 : f32 to vector<8x16xf32>
    %49 = arith.select %38, %48, %22 : vector<8x16xi1>, vector<8x16xf32>
    %cst_22 = arith.constant dense<0x7F800000> : vector<16xf32>
    %50 = vector.multi_reduction <minimumf>, %49, %cst_22 [0] : vector<8x16xf32> to vector<16xf32>
    %51 = vector.shape_cast %50 : vector<16xf32> to vector<1x16xf32>
    %52 = vector.broadcast %51 : vector<1x16xf32> to vector<8x16xf32>
    %53 = arith.cmpf oeq, %49, %52 : vector<8x16xf32>
    %c8_i32_23 = arith.constant 8 : i32
    %54 = vector.shape_cast %23 : vector<8x1xi32> to vector<8x1xi32>
    %55 = vector.broadcast %54 : vector<8x1xi32> to vector<8x16xi32>
    %56 = vector.broadcast %c8_i32_23 : i32 to vector<8x16xi32>
    %57 = arith.select %53, %55, %56 : vector<8x16xi1>, vector<8x16xi32>
    %cst_24 = arith.constant dense<2147483647> : vector<16xi32>
    %58 = vector.multi_reduction <minsi>, %57, %cst_24 [0] : vector<8x16xi32> to vector<16xi32>
    %59 = vector.shape_cast %58 : vector<16xi32> to vector<1x16xi32>
    %60 = vector.broadcast %23 : vector<8x1xi32> to vector<8x16xi32>
    %61 = vector.broadcast %59 : vector<1x16xi32> to vector<8x16xi32>
    %62 = arith.cmpi eq, %60, %61 : vector<8x16xi32>
    %cst_25 = arith.constant 9.99999968E-21 : f32
    %63 = vector.broadcast %cst_25 : f32 to vector<1x16xf32>
    %64 = arith.maximumf %51, %63 : vector<1x16xf32>
    %65 = math.rsqrt %64 : vector<1x16xf32>
    %66 = arith.addf %42, %65 : vector<1x16xf32>
    %cst_26 = arith.constant 0.000000e+00 : f32
    %67 = vector.shape_cast %65 : vector<1x16xf32> to vector<1x16xf32>
    %68 = vector.broadcast %67 : vector<1x16xf32> to vector<8x16xf32>
    %69 = vector.broadcast %cst_26 : f32 to vector<8x16xf32>
    %70 = arith.select %62, %68, %69 : vector<8x16xi1>, vector<8x16xf32>
    %71 = arith.addf %47, %70 : vector<8x16xf32>
    %cst_27 = arith.constant 0x7F800000 : f32
    %72 = vector.broadcast %cst_27 : f32 to vector<8x16xf32>
    %73 = arith.select %62, %72, %49 : vector<8x16xi1>, vector<8x16xf32>
    %cst_28 = arith.constant dense<0x7F800000> : vector<16xf32>
    %74 = vector.multi_reduction <minimumf>, %73, %cst_28 [0] : vector<8x16xf32> to vector<16xf32>
    %75 = vector.shape_cast %74 : vector<16xf32> to vector<1x16xf32>
    %76 = vector.broadcast %75 : vector<1x16xf32> to vector<8x16xf32>
    %77 = arith.cmpf oeq, %73, %76 : vector<8x16xf32>
    %c8_i32_29 = arith.constant 8 : i32
    %78 = vector.shape_cast %23 : vector<8x1xi32> to vector<8x1xi32>
    %79 = vector.broadcast %78 : vector<8x1xi32> to vector<8x16xi32>
    %80 = vector.broadcast %c8_i32_29 : i32 to vector<8x16xi32>
    %81 = arith.select %77, %79, %80 : vector<8x16xi1>, vector<8x16xi32>
    %cst_30 = arith.constant dense<2147483647> : vector<16xi32>
    %82 = vector.multi_reduction <minsi>, %81, %cst_30 [0] : vector<8x16xi32> to vector<16xi32>
    %83 = vector.shape_cast %82 : vector<16xi32> to vector<1x16xi32>
    %84 = vector.broadcast %23 : vector<8x1xi32> to vector<8x16xi32>
    %85 = vector.broadcast %83 : vector<1x16xi32> to vector<8x16xi32>
    %86 = arith.cmpi eq, %84, %85 : vector<8x16xi32>
    %cst_31 = arith.constant 9.99999968E-21 : f32
    %87 = vector.broadcast %cst_31 : f32 to vector<1x16xf32>
    %88 = arith.maximumf %75, %87 : vector<1x16xf32>
    %89 = math.rsqrt %88 : vector<1x16xf32>
    %90 = arith.addf %66, %89 : vector<1x16xf32>
    %cst_32 = arith.constant 0.000000e+00 : f32
    %91 = vector.shape_cast %89 : vector<1x16xf32> to vector<1x16xf32>
    %92 = vector.broadcast %91 : vector<1x16xf32> to vector<8x16xf32>
    %93 = vector.broadcast %cst_32 : f32 to vector<8x16xf32>
    %94 = arith.select %86, %92, %93 : vector<8x16xi1>, vector<8x16xf32>
    %95 = arith.addf %71, %94 : vector<8x16xf32>
    %96 = arith.truncf %5 : vector<8x8xf32> to vector<8x8xbf16>
    %97 = arith.truncf %95 : vector<8x16xf32> to vector<8x16xbf16>
    %cst_33 = arith.constant dense<0.000000e+00> : vector<8x16xf32>
    %98 = tpu.matmul %96, %97, %cst_33 {dimension_numbers = #tpu.dot_dimension_numbers<[1], [0], [0], [1], [0, 0, 1, 1], [], []>} : vector<8x8xbf16>, vector<8x16xbf16>, vector<8x16xf32> -> vector<8x16xf32>
    %99 = tpu.reciprocal %90 {approx = true} : vector<1x16xf32> -> vector<1x16xf32>
    %100 = vector.broadcast %99 : vector<1x16xf32> to vector<8x16xf32>
    %101 = arith.mulf %98, %100 : vector<8x16xf32>
    %102 = arith.truncf %101 : vector<8x16xf32> to vector<8x16xbf16>
    %c0_34 = arith.constant 0 : index
    %c0_35 = arith.constant 0 : index
    %c0_36 = arith.constant 0 : index
    %103 = vector.load %arg6[%c0_34, %c0_35, %c0_36] : memref<1x12x16xbf16, #tpu.memory_space<vmem>>, vector<1x8x16xbf16>
    %104 = vector.shape_cast %103 : vector<1x8x16xbf16> to vector<8x16xbf16>
    %105 = vector.shape_cast %102 : vector<8x16xbf16> to vector<1x8x16xbf16>
    tpu.vector_store %arg6[%c0_34, %c0_35, %c0_36], %105 {strides = array<i32>} : memref<1x12x16xbf16, #tpu.memory_space<vmem>>, vector<1x8x16xbf16>,
    %106 = arith.truncf %7 : vector<4x16xf32> to vector<4x16xbf16>
    %c0_37 = arith.constant 0 : index
    %c8 = arith.constant 8 : index
    %c0_38 = arith.constant 0 : index
    %107 = vector.load %arg6[%c0_37, %c8, %c0_38] : memref<1x12x16xbf16, #tpu.memory_space<vmem>>, vector<1x4x16xbf16>
    %108 = vector.shape_cast %107 : vector<1x4x16xbf16> to vector<4x16xbf16>
    %109 = vector.shape_cast %106 : vector<4x16xbf16> to vector<1x4x16xbf16>
    tpu.vector_store %arg6[%c0_37, %c8, %c0_38], %109 {strides = array<i32>} : memref<1x12x16xbf16, #tpu.memory_space<vmem>>, vector<1x4x16xbf16>,
    return
  }
  func.func @transform_0(%arg0: i32, %arg1: i32) -> (i32, i32, i32) {
    %c0_i32 = arith.constant 0 : i32
    %c0_i32_0 = arith.constant 0 : i32
    return %arg0, %c0_i32, %arg1 : i32, i32, i32
  }
  func.func @transform_1(%arg0: i32, %arg1: i32) -> (i32, i32, i32) {
    %c0_i32 = arith.constant 0 : i32
    %c0_i32_0 = arith.constant 0 : i32
    %c0_i32_1 = arith.constant 0 : i32
    return %arg0, %c0_i32, %c0_i32_0 : i32, i32, i32
  }
  func.func @transform_2(%arg0: i32, %arg1: i32) -> (i32, i32, i32) {
    %c0_i32 = arith.constant 0 : i32
    %c0_i32_0 = arith.constant 0 : i32
    %c0_i32_1 = arith.constant 0 : i32
    return %arg0, %c0_i32, %c0_i32_0 : i32, i32, i32
  }
  func.func @transform_3(%arg0: i32, %arg1: i32) -> (i32, i32, i32) {
    %c0_i32 = arith.constant 0 : i32
    %c0_i32_0 = arith.constant 0 : i32
    return %arg0, %c0_i32, %arg1 : i32, i32, i32
  }
  func.func @transform_4(%arg0: i32, %arg1: i32) -> (i32, i32, i32) {
    %c0_i32 = arith.constant 0 : i32
    %c0_i32_0 = arith.constant 0 : i32
    return %arg0, %c0_i32, %arg1 : i32, i32, i32
  }
}

</mosaic_0001>

<llo_original>
// kernel: tpu_custom_call.1
$region0: #{tpu_custom_call.1}
  #allocation0 [shape = 'u32[]', space=smem, size = 0x4, offset = 0x4, fixed_abs, tag = 'smem constant byte address 0x4 - core index']
  #allocation1 [shape = 'u32[144,128]{1,0:T(1,128)}', space=vmem, size = 0x12000, scoped, tag = 'internal scratch']
  %s0 = inlined_call_operand.vmem [shape: f32[2,3,16], index: 0, kind: input, shape index: {}]
  %s1 = inlined_call_operand.vmem [shape: f32[2,8,3], index: 1, kind: input, shape index: {}]
  %s2 = inlined_call_operand.vmem [shape: f32[2,8,8], index: 2, kind: input, shape index: {}]
  %s3 = inlined_call_operand.vmem [shape: f32[2,4,16], index: 3, kind: input, shape index: {}]
  %s4 = inlined_call_operand.vmem [shape: bf16[2,12,16], index: 4, kind: output, shape index: {}]
  %s5 = sld [smem:[#allocation0]]
  $region49: #{tpu_custom_call.1} parent=0
    _
  %s7 = ssub.s32 1, %s5
  %s8 = scalar_select 0, %s7, %s5
  loop: start=0, step=1, limit=4
  $region2: #{tpu_custom_call.1} parent=0 // loop_pre_header
    _
  $region3: #{tpu_custom_call.1} parent=0 // loop_header
    %s10 = sphi 0, %s14
    %p11 = scmp.ge.s32.totalorder %s10, 4
    %s17 = sphi 0, %s29
    %s18 = sphi 0, %s25
    %s19 = sphi 0, %s17
    %s20 = sphi 0, %s18
    %s21 = sphi 0, %s19
    %s22 = sphi 0, %s20
    %s34 = sphi 0, %s36
    %s37 = sphi 0, %s34
    %s38 = sphi 0, %s37
    %s54 = sphi 0, %s38
    %s60 = sphi 0, %s62
    %s63 = sphi 0, %s60
    %s64 = sphi 0, %s63
    %s80 = sphi 0, %s64
    %s86 = sphi 0, %s88
    %s89 = sphi 0, %s86
    %s90 = sphi 0, %s89
    %s106 = sphi 0, %s90
    %s114 = sphi 0, %s116
    %s117 = sphi 0, %s114
    %s118 = sphi 0, %s117
    %s134 = sphi 0, %s118
    %s142 = sphi 0, %s144
    %s145 = sphi 0, %s142
    %s146 = sphi 0, %s145
    %s162 = sphi 0, %s146
  $region4: #{tpu_custom_call.1} parent=0 // loop_header_branch
    %13 = sbr.rel (%p11) target = $region8
  $region5: #{tpu_custom_call.1} parent=0 // loop_body
    %s15 = ssub.s32 %s10, 1
    %s16 = ssub.s32 %s10, 2
    %s23 = sadd.s32 1, %s18
    %p24 = scmp.ge.s32.totalorder %s23, 1
    %s25 = scalar_select %p24, 0, %s23
    %s26 = sadd.s32 1, %s17
    %s27 = scalar_select %p24, %s26, %s17
    %p28 = scmp.ge.s32.totalorder %s27, 2
    %s29 = scalar_select %p28, 0, %s27
    %s30 = ssub.s32 %s17, %s29
    %s31 = ssub.s32 %s18, %s25
    %s32 = sor.u32 %s30, %s31
    %p33 = scmp.eq.s32.totalorder %s32, 0
    %s35 = sadd.s32 %s34, 1
    %s36 = scalar_select %p33, %s34, %s35
    %p39 = pneg %p33
    %p40 = scmp.eq.s32.totalorder %s10, 1
    %p41 = por %p39, %p40
    %p42 = scmp.ne.s32.totalorder %s34, %s37
    %p43 = scmp.eq.s32.totalorder %s10, 0
    %p44 = por %p42, %p43
    %p45 = scmp.ne.s32.totalorder %s34, %s37
    %p46 = scmp.eq.s32.totalorder %s15, 1
    %p47 = por %p45, %p46
    %p48 = scmp.ne.s32.totalorder %s37, %s38
    %p49 = scmp.eq.s32.totalorder %s15, 0
    %p50 = por %p48, %p49
    %p51 = scmp.ne.s32.totalorder %s37, %s38
    %p52 = scmp.eq.s32.totalorder %s16, 1
    %p53 = por %p51, %p52
    %p55 = scmp.ne.s32.totalorder %s38, %s54
    %p56 = scmp.eq.s32.totalorder %s16, 0
    %p57 = por %p55, %p56
    %s58 = ssub.s32 %s17, %s29
    %p59 = scmp.eq.s32.totalorder %s58, 0
    %s61 = sadd.s32 %s60, 1
    %s62 = scalar_select %p59, %s60, %s61
    %p65 = pneg %p59
    %p66 = scmp.eq.s32.totalorder %s10, 1
    %p67 = por %p65, %p66
    %p68 = scmp.ne.s32.totalorder %s60, %s63
    %p69 = scmp.eq.s32.totalorder %s10, 0
    %p70 = por %p68, %p69
    %p71 = scmp.ne.s32.totalorder %s60, %s63
    %p72 = scmp.eq.s32.totalorder %s15, 1
    %p73 = por %p71, %p72
    %p74 = scmp.ne.s32.totalorder %s63, %s64
    %p75 = scmp.eq.s32.totalorder %s15, 0
    %p76 = por %p74, %p75
    %p77 = scmp.ne.s32.totalorder %s63, %s64
    %p78 = scmp.eq.s32.totalorder %s16, 1
    %p79 = por %p77, %p78
    %p81 = scmp.ne.s32.totalorder %s64, %s80
    %p82 = scmp.eq.s32.totalorder %s16, 0
    %p83 = por %p81, %p82
    %s84 = ssub.s32 %s17, %s29
    %p85 = scmp.eq.s32.totalorder %s84, 0
    %s87 = sadd.s32 %s86, 1
    %s88 = scalar_select %p85, %s86, %s87
    %p91 = pneg %p85
    %p92 = scmp.eq.s32.totalorder %s10, 1
    %p93 = por %p91, %p92
    %p94 = scmp.ne.s32.totalorder %s86, %s89
    %p95 = scmp.eq.s32.totalorder %s10, 0
    %p96 = por %p94, %p95
    %p97 = scmp.ne.s32.totalorder %s86, %s89
    %p98 = scmp.eq.s32.totalorder %s15, 1
    %p99 = por %p97, %p98
    %p100 = scmp.ne.s32.totalorder %s89, %s90
    %p101 = scmp.eq.s32.totalorder %s15, 0
    %p102 = por %p100, %p101
    %p103 = scmp.ne.s32.totalorder %s89, %s90
    %p104 = scmp.eq.s32.totalorder %s16, 1
    %p105 = por %p103, %p104
    %p107 = scmp.ne.s32.totalorder %s90, %s106
    %p108 = scmp.eq.s32.totalorder %s16, 0
    %p109 = por %p107, %p108
    %s110 = ssub.s32 %s17, %s29
    %s111 = ssub.s32 %s18, %s25
    %s112 = sor.u32 %s110, %s111
    %p113 = scmp.eq.s32.totalorder %s112, 0
    %s115 = sadd.s32 %s114, 1
    %s116 = scalar_select %p113, %s114, %s115
    %p119 = pneg %p113
    %p120 = scmp.eq.s32.totalorder %s10, 1
    %p121 = por %p119, %p120
    %p122 = scmp.ne.s32.totalorder %s114, %s117
    %p123 = scmp.eq.s32.totalorder %s10, 0
    %p124 = por %p122, %p123
    %p125 = scmp.ne.s32.totalorder %s114, %s117
    %p126 = scmp.eq.s32.totalorder %s15, 1
    %p127 = por %p125, %p126
    %p128 = scmp.ne.s32.totalorder %s117, %s118
    %p129 = scmp.eq.s32.totalorder %s15, 0
    %p130 = por %p128, %p129
    %p131 = scmp.ne.s32.totalorder %s117, %s118
    %p132 = scmp.eq.s32.totalorder %s16, 1
    %p133 = por %p131, %p132
    %p135 = scmp.ne.s32.totalorder %s118, %s134
    %p136 = scmp.eq.s32.totalorder %s16, 0
    %p137 = por %p135, %p136
    %s138 = ssub.s32 %s17, %s29
    %s139 = ssub.s32 %s18, %s25
    %s140 = sor.u32 %s138, %s139
    %p141 = scmp.eq.s32.totalorder %s140, 0
    %s143 = sadd.s32 %s142, 1
    %s144 = scalar_select %p141, %s142, %s143
    %p147 = pneg %p141
    %p148 = scmp.eq.s32.totalorder %s10, 1
    %p149 = por %p147, %p148
    %p150 = scmp.ne.s32.totalorder %s142, %s145
    %p151 = scmp.eq.s32.totalorder %s10, 0
    %p152 = por %p150, %p151
    %p153 = scmp.ne.s32.totalorder %s142, %s145
    %p154 = scmp.eq.s32.totalorder %s15, 1
    %p155 = por %p153, %p154
    %p156 = scmp.ne.s32.totalorder %s145, %s146
    %p157 = scmp.eq.s32.totalorder %s15, 0
    %p158 = por %p156, %p157
    %p159 = scmp.ne.s32.totalorder %s145, %s146
    %p160 = scmp.eq.s32.totalorder %s16, 1
    %p161 = por %p159, %p160
    %p163 = scmp.ne.s32.totalorder %s146, %s162
    %p164 = scmp.eq.s32.totalorder %s16, 0
    %p165 = por %p163, %p164
    %p166 = scmp.le.s32.totalorder 1, %s10
    %p167 = scmp.lt.s32.totalorder %s10, 3
    %p168 = pnand %p166, %p167
    %p169 = pneg %p168
    // Predicated region
    $region9: #{tpu_custom_call.1} parent=5 // pred_check
      _
    $region10: #{tpu_custom_call.1} parent=5 // pred_check_branch
      %171 = sbr.rel (%p168) target = $region12
    $region11: #{tpu_custom_call.1} parent=5 // pred_region
      %s172 = ssub.s32 %s10, 1
    $region12: #{tpu_custom_call.1} parent=5 // pred_fallthru
      _
    %p173 = scmp.lt.s32.totalorder %s10, 2
    // Predicated region
    $region13: #{tpu_custom_call.1} parent=5 // pred_check
      %p174 = pneg %p173
    $region14: #{tpu_custom_call.1} parent=5 // pred_check_branch
      %176 = sbr.rel (%p174) target = $region16
    $region15: #{tpu_custom_call.1} parent=5 // pred_region
      // Predicated region
      $region17: #{tpu_custom_call.1} parent=15 // pred_check
        %p177 = pneg %p44
      $region18: #{tpu_custom_call.1} parent=15 // pred_check_branch
        %179 = sbr.rel (%p177) target = $region20
      $region19: #{tpu_custom_call.1} parent=15 // pred_region
        %p180 = scmp.lt.s32.totalorder %s17, 1
        %s181 = scalar_select %p180, %s17, 1
        %p182 = scmp.lt.s32.totalorder %s18, 0
        %s183 = scalar_select %p182, %s18, 0
        %s184 = sadd.s32 %s183, %s181
        %s185 = smul.addr %s184, 4
        %s186 = scalar_lea.vmem %s0, %s185
      $region20: #{tpu_custom_call.1} parent=15 // pred_fallthru
        _
      // Predicated region
      $region21: #{tpu_custom_call.1} parent=15 // pred_check
        %p187 = pneg %p70
      $region22: #{tpu_custom_call.1} parent=15 // pred_check_branch
        %189 = sbr.rel (%p187) target = $region24
      $region23: #{tpu_custom_call.1} parent=15 // pred_region
        %p190 = scmp.lt.s32.totalorder %s17, 1
        %s191 = scalar_select %p190, %s17, 1
        %s192 = smul.addr %s191, 8
        %s193 = scalar_lea.vmem %s1, %s192
      $region24: #{tpu_custom_call.1} parent=15 // pred_fallthru
        _
      // Predicated region
      $region25: #{tpu_custom_call.1} parent=15 // pred_check
        %p194 = pneg %p96
      $region26: #{tpu_custom_call.1} parent=15 // pred_check_branch
        %196 = sbr.rel (%p194) target = $region28
      $region27: #{tpu_custom_call.1} parent=15 // pred_region
        %p197 = scmp.lt.s32.totalorder %s17, 1
        %s198 = scalar_select %p197, %s17, 1
        %s199 = smul.addr %s198, 8
        %s200 = scalar_lea.vmem %s2, %s199
      $region28: #{tpu_custom_call.1} parent=15 // pred_fallthru
        _
      // Predicated region
      $region29: #{tpu_custom_call.1} parent=15 // pred_check
        %p201 = pneg %p124
      $region30: #{tpu_custom_call.1} parent=15 // pred_check_branch
        %203 = sbr.rel (%p201) target = $region32
      $region31: #{tpu_custom_call.1} parent=15 // pred_region
        %p204 = scmp.lt.s32.totalorder %s17, 1
        %s205 = scalar_select %p204, %s17, 1
        %p206 = scmp.lt.s32.totalorder %s18, 0
        %s207 = scalar_select %p206, %s18, 0
        %s208 = sadd.s32 %s207, %s205
        %s209 = smul.addr %s208, 4
        %s210 = scalar_lea.vmem %s3, %s209
      $region32: #{tpu_custom_call.1} parent=15 // pred_fallthru
        _
    $region16: #{tpu_custom_call.1} parent=5 // pred_fallthru
      _
    %p211 = scmp.le.s32.totalorder 1, %s10
    %p212 = scmp.lt.s32.totalorder %s10, 3
    %p213 = pnand %p211, %p212
    %p214 = pneg %p213
    // Predicated region
    $region33: #{tpu_custom_call.1} parent=5 // pred_check
      _
    $region34: #{tpu_custom_call.1} parent=5 // pred_check_branch
      %216 = sbr.rel (%p213) target = $region36
    $region35: #{tpu_custom_call.1} parent=5 // pred_region
      %s217 = ssub.s32 %s10, 1
      %p218 = scmp.lt.s32.totalorder %s19, 1
      %s219 = scalar_select %p218, %s19, 1
      %p220 = scmp.lt.s32.totalorder %s20, 0
      %s221 = scalar_select %p220, %s20, 0
      %s222 = sadd.s32 %s221, %s219
      %s223 = smul.addr %s222, 4
      %s224 = scalar_lea.vmem %s0, %s223
      %p225 = pneg %p50
      %p226 = pneg %p47
      %p227 = scmp.lt.s32.totalorder %s19, 1
      %s228 = scalar_select %p227, %s19, 1
      %s229 = smul.addr %s228, 8
      %s230 = scalar_lea.vmem %s1, %s229
      %p231 = pneg %p76
      %p232 = pneg %p73
      %p233 = scmp.lt.s32.totalorder %s19, 1
      %s234 = scalar_select %p233, %s19, 1
      %s235 = smul.addr %s234, 8
      %s236 = scalar_lea.vmem %s2, %s235
      %p237 = pneg %p102
      %p238 = pneg %p99
      %p239 = scmp.lt.s32.totalorder %s19, 1
      %s240 = scalar_select %p239, %s19, 1
      %p241 = scmp.lt.s32.totalorder %s20, 0
      %s242 = scalar_select %p241, %s20, 0
      %s243 = sadd.s32 %s242, %s240
      %s244 = smul.addr %s243, 4
      %s245 = scalar_lea.vmem %s3, %s244
      %p246 = pneg %p130
      %p247 = pneg %p127
      %p248 = pneg %p158
      %p249 = pneg %p155
      %p250 = scmp.lt.s32.totalorder %s19, 1
      %s251 = scalar_select %p250, %s19, 1
      %p252 = scmp.lt.s32.totalorder %s20, 0
      %s253 = scalar_select %p252, %s20, 0
      %s254 = smul.addr %s251, 2
      %s255 = sadd.s32 %s253, %s254
      %s256 = smul.addr %s255, 4
      %s257 = scalar_lea.vmem %s4, %s256
      %p258 = scmp.lt.s32.totalorder %s19, 1
      %s259 = scalar_select %p258, %s19, 1
      %p260 = scmp.lt.s32.totalorder %s20, 0
      %s261 = scalar_select %p260, %s20, 0
      %s262 = sadd.s32 %s261, %s259
      %s263 = smul.addr %s262, 4
      %s264 = scalar_lea.vmem %s0, %s263
      %p265 = scmp.lt.s32.totalorder %s19, 1
      %s266 = scalar_select %p265, %s19, 1
      %s267 = smul.addr %s266, 8
      %s268 = scalar_lea.vmem %s1, %s267
      %p269 = scmp.lt.s32.totalorder %s19, 1
      %s270 = scalar_select %p269, %s19, 1
      %s271 = smul.addr %s270, 8
      %s272 = scalar_lea.vmem %s2, %s271
      %p273 = scmp.lt.s32.totalorder %s19, 1
      %s274 = scalar_select %p273, %s19, 1
      %p275 = scmp.lt.s32.totalorder %s20, 0
      %s276 = scalar_select %p275, %s20, 0
      %s277 = sadd.s32 %s276, %s274
      %s278 = smul.addr %s277, 4
      %s279 = scalar_lea.vmem %s3, %s278
      %p280 = scmp.lt.s32.totalorder %s19, 1
      %s281 = scalar_select %p280, %s19, 1
      %p282 = scmp.lt.s32.totalorder %s20, 0
      %s283 = scalar_select %p282, %s20, 0
      %s284 = smul.addr %s281, 2
      %s285 = sadd.s32 %s283, %s284
      %s286 = smul.addr %s285, 4
      %s287 = scalar_lea.vmem %s4, %s286
      %v289 = vld [vmem:[%s264] sm:$0x7]
      %v290 = vld [vmem:[%s268] sm:$0xff]
      %v291 = vld [vmem:[%s272] sm:$0xff]
      %v292 = vld [vmem:[%s279] sm:$0xf]
      %v293 = vmul.f32 %v289, %v289
      %vm294 = vcmask 124928
      %v295 = vsel %vm294, %v293, 0.0
      %v296 = vrot.slane %v295, 4
      %v297 = vadd.f32 %v295, %v296
      %v298 = vrot.slane %v297, 2
      %v299 = vadd.f32 %v297, %v298
      %v300 = vrot.slane %v299, 1
      %v301 = vadd.f32 %v299, %v300
      %v302 = vmul.f32 %v290, %v290
      %vm303 = vcmask 23552
      %v304 = vsel %vm303, %v302, 0.0
      %305 = vadd.xlane.f32.xlu0 %v304
      %v306 = vpop.xlane.xlu0 %305
      %v308 = vsel %vm303, %v290, 0
      %vm310 = vcmask 1042432
      %v312 = vsel %vm310, %v289, 0
      %314 = vmatprep.subr.mxu0 0.0
      %315 = vmatpush1.msra.mxu0 0.0
      %316 = vmatprep.subr.mxu0 0.0
      %317 = vmatpush1.msra.mxu0 0.0
      %318 = vmatprep.subr.mxu0 0.0
      %319 = vmatpush1.msra.mxu0 0.0
      %320 = vmatprep.subr.mxu0 0.0
      %321 = vmatpush1.msra.mxu0 0.0
      %322 = vmatprep.subr.mxu0 0.0
      %323 = vmatpush1.msra.mxu0 0.0
      %324 = vmatprep.subr.mxu0 0.0
      %325 = vmatpush1.msra.mxu0 0.0
      %326 = vmatprep.subr.mxu0 0.0
      %327 = vmatpush1.msra.mxu0 0.0
      %328 = vmatprep.subr.mxu0 0.0
      %329 = vmatpush1.msra.mxu0 0.0
      %330 = vmatprep.subr.mxu0 0.0
      %331 = vmatpush1.msra.mxu0 0.0
      %332 = vmatprep.subr.mxu0 0.0
      %333 = vmatpush1.msra.mxu0 0.0
      %334 = vmatprep.subr.mxu0 0.0
      %335 = vmatpush1.msra.mxu0 0.0
      %336 = vmatprep.subr.mxu0 0.0
      %337 = vmatpush1.msra.mxu0 0.0
      %338 = vmatprep.subr.mxu0 0.0
      %339 = vmatpush1.msra.mxu0 0.0
      %340 = vmatprep.subr.mxu0 0.0
      %341 = vmatpush1.msra.mxu0 0.0
      %342 = vmatprep.subr.mxu0 0.0
      %343 = vmatpush1.msra.mxu0 0.0
      %344 = vmatprep.subr.mxu0 0.0
      %345 = vmatpush1.msra.mxu0 %v312
      %346 = vmatprep.subr.mxu0 0.0
      %347 = vmatpush2.msra.mxu0 0.0
      %348 = vmatprep.subr.mxu0 0.0
      %349 = vmatpush2.msra.mxu0 0.0
      %350 = vmatprep.subr.mxu0 0.0
      %351 = vmatpush2.msra.mxu0 0.0
      %352 = vmatprep.subr.mxu0 0.0
      %353 = vmatpush2.msra.mxu0 0.0
      %354 = vmatprep.subr.mxu0 0.0
      %355 = vmatpush2.msra.mxu0 0.0
      %356 = vmatprep.subr.mxu0 0.0
      %357 = vmatpush2.msra.mxu0 0.0
      %358 = vmatprep.subr.mxu0 0.0
      %359 = vmatpush2.msra.mxu0 0.0
      %360 = vmatprep.subr.mxu0 0.0
      %361 = vmatpush2.msra.mxu0 0.0
      %362 = vmatprep.subr.mxu0 0.0
      %363 = vmatpush2.msra.mxu0 0.0
      %364 = vmatprep.subr.mxu0 0.0
      %365 = vmatpush2.msra.mxu0 0.0
      %366 = vmatprep.subr.mxu0 0.0
      %367 = vmatpush2.msra.mxu0 0.0
      %368 = vmatprep.subr.mxu0 0.0
      %369 = vmatpush2.msra.mxu0 0.0
      %370 = vmatprep.subr.mxu0 0.0
      %371 = vmatpush2.msra.mxu0 0.0
      %372 = vmatprep.subr.mxu0 0.0
      %373 = vmatpush2.msra.mxu0 0.0
      %374 = vmatprep.subr.mxu0 0.0
      %375 = vmatpush2.msra.mxu0 0.0
      %376 = vmatprep.subr.mxu0 0.0
      %377 = vmatpush2.msra.mxu0 0.0
      %378 = vmatprep.mubr.f32.mxu0 0.0
      %379 = vmatmul.mubr.f32.gmra.mxu0 %v308
      %v380 = vpop.f32.mrf.mxu0
      %v381 = vadd.f32 0.0, %v380
      %v382 = vpop.f32.mrf.mxu0
      %383 = vdwg.mxu0
      %v384 = vadd.f32 %v306, %v301
      %v385 = vmul.f32 %v381, 2.0
      %v386 = vsub.f32 %v384, %v385
      %v387 = vmax.f32 %v386, 0.0
      %v388 = vlaneseq
      %v389 = vshrl.u32 %v388, 7
      %vm390 = vcmask 130048
      %v391 = vsel %vm390, %v387, inf
      %v392 = vrot.slane %v391, 4
      %v393 = vmin.f32 %v391, %v392
      %v394 = vrot.slane %v393, 2
      %v395 = vmin.f32 %v393, %v394
      %v396 = vrot.slane %v395, 1
      %v397 = vmin.f32 %v395, %v396
      %vm398 = vcmp.eq.f32.partialorder %v387, %v397
      %v399 = vsel %vm398, %v389, 8
      %v400 = vsel %vm390, %v399, 2147483647
      %v401 = vrot.slane %v400, 4
      %vm402 = vcmp.lt.s32.totalorder %v400, %v401
      %v403 = vsel %vm402, %v400, %v401
      %v404 = vrot.slane %v403, 2
      %vm405 = vcmp.lt.s32.totalorder %v403, %v404
      %v406 = vsel %vm405, %v403, %v404
      %v407 = vrot.slane %v406, 1
      %vm408 = vcmp.lt.s32.totalorder %v406, %v407
      %v409 = vsel %vm408, %v406, %v407
      %vm410 = vcmp.eq.s32.totalorder %v389, %v409
      %v411 = vmax.f32 %v397, 1e-20
      %v412 = vrsqrt.pop %v411
      %v413 = vadd.f32 %v412, 0.0
      %v414 = vsel %vm410, %v412, 0.0
      %v415 = vadd.f32 %v414, 0.0
      %v416 = vsel %vm410, inf, %v387
      %v417 = vsel %vm390, %v416, inf
      %v418 = vrot.slane %v417, 4
      %v419 = vmin.f32 %v417, %v418
      %v420 = vrot.slane %v419, 2
      %v421 = vmin.f32 %v419, %v420
      %v422 = vrot.slane %v421, 1
      %v423 = vmin.f32 %v421, %v422
      %vm424 = vcmp.eq.f32.partialorder %v416, %v423
      %v425 = vsel %vm424, %v389, 8
      %v426 = vsel %vm390, %v425, 2147483647
      %v427 = vrot.slane %v426, 4
      %vm428 = vcmp.lt.s32.totalorder %v426, %v427
      %v429 = vsel %vm428, %v426, %v427
      %v430 = vrot.slane %v429, 2
      %vm431 = vcmp.lt.s32.totalorder %v429, %v430
      %v432 = vsel %vm431, %v429, %v430
      %v433 = vrot.slane %v432, 1
      %vm434 = vcmp.lt.s32.totalorder %v432, %v433
      %v435 = vsel %vm434, %v432, %v433
      %vm436 = vcmp.eq.s32.totalorder %v389, %v435
      %v437 = vmax.f32 %v423, 1e-20
      %v438 = vrsqrt.pop %v437
      %v439 = vadd.f32 %v413, %v438
      %v440 = vsel %vm436, %v438, 0.0
      %v441 = vadd.f32 %v415, %v440
      %v442 = vsel %vm436, inf, %v416
      %v443 = vsel %vm390, %v442, inf
      %v444 = vrot.slane %v443, 4
      %v445 = vmin.f32 %v443, %v444
      %v446 = vrot.slane %v445, 2
      %v447 = vmin.f32 %v445, %v446
      %v448 = vrot.slane %v447, 1
      %v449 = vmin.f32 %v447, %v448
      %vm450 = vcmp.eq.f32.partialorder %v442, %v449
      %v451 = vsel %vm450, %v389, 8
      %v452 = vsel %vm390, %v451, 2147483647
      %v453 = vrot.slane %v452, 4
      %vm454 = vcmp.lt.s32.totalorder %v452, %v453
      %v455 = vsel %vm454, %v452, %v453
      %v456 = vrot.slane %v455, 2
      %vm457 = vcmp.lt.s32.totalorder %v455, %v456
      %v458 = vsel %vm457, %v455, %v456
      %v459 = vrot.slane %v458, 1
      %vm460 = vcmp.lt.s32.totalorder %v458, %v459
      %v461 = vsel %vm460, %v458, %v459
      %vm462 = vcmp.eq.s32.totalorder %v389, %v461
      %v463 = vmax.f32 %v449, 1e-20
      %v464 = vrsqrt.pop %v463
      %v465 = vadd.f32 %v439, %v464
      %v466 = vsel %vm462, %v464, 0.0
      %v467 = vadd.f32 %v441, %v466
      %v468 = vpack.c.bf16 %v291, %v291
      %v469 = vpack.c.bf16 %v467, %v467
      %vm470 = vcmask 64512
      %v472 = vsel %vm470, %v468, 0
      %vm474 = vcmask 1043456
      %v476 = vsel %vm474, %v469, 0
      %478 = vmatprep.subr.bf16.mxu0 0
      %479 = vmatpush1.bf16.msra.mxu0 0
      %480 = vmatprep.subr.bf16.mxu0 0
      %481 = vmatpush1.bf16.msra.mxu0 0
      %482 = vmatprep.subr.bf16.mxu0 0
      %483 = vmatpush1.bf16.msra.mxu0 0
      %484 = vmatprep.subr.bf16.mxu0 0
      %485 = vmatpush1.bf16.msra.mxu0 0
      %486 = vmatprep.subr.bf16.mxu0 0
      %487 = vmatpush1.bf16.msra.mxu0 0
      %488 = vmatprep.subr.bf16.mxu0 0
      %489 = vmatpush1.bf16.msra.mxu0 0
      %490 = vmatprep.subr.bf16.mxu0 0
      %491 = vmatpush1.bf16.msra.mxu0 0
      %492 = vmatprep.subr.bf16.mxu0 0
      %493 = vmatpush1.bf16.msra.mxu0 %v476
      %494 = vmatprep.subr.bf16.mxu0 0
      %495 = vmatpush2.bf16.msra.mxu0 0
      %496 = vmatprep.subr.bf16.mxu0 0
      %497 = vmatpush2.bf16.msra.mxu0 0
      %498 = vmatprep.subr.bf16.mxu0 0
      %499 = vmatpush2.bf16.msra.mxu0 0
      %500 = vmatprep.subr.bf16.mxu0 0
      %501 = vmatpush2.bf16.msra.mxu0 0
      %502 = vmatprep.subr.bf16.mxu0 0
      %503 = vmatpush2.bf16.msra.mxu0 0
      %504 = vmatprep.subr.bf16.mxu0 0
      %505 = vmatpush2.bf16.msra.mxu0 0
      %506 = vmatprep.subr.bf16.mxu0 0
      %507 = vmatpush2.bf16.msra.mxu0 0
      %508 = vmatprep.subr.bf16.mxu0 0
      %509 = vmatpush2.bf16.msra.mxu0 0
      %510 = vmatprep.mubr.bf16.mxu0 0
      %511 = vmatmul.mubr.bf16.gmra.mxu0 %v472
      %v512 = vpop.f32.mrf.mxu0
      %v513 = vadd.f32 0.0, %v512
      %v514 = vpop.f32.mrf.mxu0
      %v515 = vpop.f32.mrf.mxu0
      %v516 = vpop.f32.mrf.mxu0
      %517 = vdwg.mxu0
      %v518 = vrcp.pop %v465
      %v519 = vmul.f32 %v513, %v518
      %v520 = vpack.c.bf16 %v519, %v519
      %vm521 = vcmask 125952
      %522 = vst.msk [vmem:[%s287] sm:$0xf] %vm521, %v520
      %v523 = vpack.c.bf16 %v292, %v292
      %vm524 = vcmask 123904
      %525 = vst.msk [vmem:[%s287 + $0x4] sm:$0x3] %vm524, %v523
      %p526 = scmp.lt.s32.totalorder %s19, 1
      %s527 = scalar_select %p526, %s19, 1
      %p528 = scmp.lt.s32.totalorder %s20, 0
      %s529 = scalar_select %p528, %s20, 0
      %s530 = smul.addr %s527, 2
      %s531 = sadd.s32 %s529, %s530
      %s532 = smul.addr %s531, 4
      %s533 = scalar_lea.vmem %s4, %s532
      // Predicated region
      $region37: #{tpu_custom_call.1} parent=35 // pred_check
        %p534 = pneg %p155
      $region38: #{tpu_custom_call.1} parent=35 // pred_check_branch
        %536 = sbr.rel (%p534) target = $region40
      $region39: #{tpu_custom_call.1} parent=35 // pred_region
        _
      $region40: #{tpu_custom_call.1} parent=35 // pred_fallthru
        _
    $region36: #{tpu_custom_call.1} parent=5 // pred_fallthru
      _
    %p537 = scmp.le.s32.totalorder 2, %s10
    // Predicated region
    $region41: #{tpu_custom_call.1} parent=5 // pred_check
      %p538 = pneg %p537
    $region42: #{tpu_custom_call.1} parent=5 // pred_check_branch
      %540 = sbr.rel (%p538) target = $region44
    $region43: #{tpu_custom_call.1} parent=5 // pred_region
      %s541 = ssub.s32 %s10, 2
      // Predicated region
      $region45: #{tpu_custom_call.1} parent=43 // pred_check
        %p542 = pneg %p161
      $region46: #{tpu_custom_call.1} parent=43 // pred_check_branch
        %544 = sbr.rel (%p542) target = $region48
      $region47: #{tpu_custom_call.1} parent=43 // pred_region
        %p545 = scmp.lt.s32.totalorder %s21, 1
        %s546 = scalar_select %p545, %s21, 1
        %p547 = scmp.lt.s32.totalorder %s22, 0
        %s548 = scalar_select %p547, %s22, 0
        %s549 = smul.addr %s546, 2
        %s550 = sadd.s32 %s548, %s549
        %s551 = smul.addr %s550, 4
        %s552 = scalar_lea.vmem %s4, %s551
      $region48: #{tpu_custom_call.1} parent=43 // pred_fallthru
        _
    $region44: #{tpu_custom_call.1} parent=5 // pred_fallthru
      _
  $region6: #{tpu_custom_call.1} parent=0 // loop_footer
    %s14 = sadd.s32 1, %s10
  $region7: #{tpu_custom_call.1} parent=0 // loop_footer_branch
    %9 = sbr.rel target = $region3
  $region8: #{tpu_custom_call.1} parent=0 // loop_exit
    _

</llo_original>
